<compile_context>
chip_gen: v7x
topology: tpu7x:2x2x1
jax: 0.10.0
libtpu: 0.0.40
codegen_flags: <defaults>
</compile_context>

<pallas_src>
import functools

import jax
import jax.numpy as jnp
from jax.experimental import pallas as pl
from jax.experimental.pallas import tpu as pltpu


def _has_bf16_valu():
    """v6e / v7x have full-rate bf16 VALU; v2–v5 do not (bf16 elementwise would
    unpack/repack and regress there, so keep the LN tail in f32)."""
    try:
        kind = jax.devices()[0].device_kind.lower()
    except Exception:
        return True
    return not any(tag in kind for tag in ("v2", "v3", "v4", "v5"))


def qli_kernel(text_ref, metrics_ref,
               w1_ref, w2a_ref, w2b_ref, w3_ref,
               vecs_ref, out_ref, *, bf16_tail):
    eps = 1e-5
    h = out_ref.shape[-1]
    inv_h = 1.0 / h

    # Packed per-feature f32 vectors: rows = b1, g1, be1, b2, g2, be2, b3, pad.
    vecs = vecs_ref[...]
    b1, g1, be1 = vecs[0:1, :], vecs[1:2, :], vecs[2:3, :]
    b2, g2, be2 = vecs[3:4, :], vecs[4:5, :], vecs[5:6, :]
    b3 = vecs[6:7, :]

    def ln_relu(x, g, b):
        # Fused single-pass statistics in f32 (sum + sum-of-squares on XLU).
        s1 = jnp.sum(x, axis=-1, keepdims=True)
        s2 = jnp.sum(x * x, axis=-1, keepdims=True)
        mu = s1 * inv_h
        var = s2 * inv_h - mu * mu          # no clamp: rsqrt(var + eps) is safe here
        rstd = jax.lax.rsqrt(var + eps)
        if bf16_tail:
            # v6e/v7x: normalize + affine + ReLU in bf16 (2 elem/lane VALU);
            # this directly produces the next bf16 MXU operand and deletes a
            # separate full-tile cast.
            y = (x.astype(jnp.bfloat16) - mu.astype(jnp.bfloat16)) \
                * rstd.astype(jnp.bfloat16)
            y = y * g.astype(jnp.bfloat16) + b.astype(jnp.bfloat16)
        else:
            # v5e and older: no bf16 VALU — keep the tail in f32, cast once.
            y = ((x - mu) * rstd * g + b).astype(jnp.bfloat16)
        return jnp.maximum(y, 0.0)

    # Activations arrive as f32 and are cast to bf16 on the VPU right before
    # the MXU (no wrapper-side HBM cast pass).
    tb = text_ref[...].astype(jnp.bfloat16)
    mb = metrics_ref[...].astype(jnp.bfloat16)

    # ---- metrics_encoder: Linear(M -> H) + LayerNorm + ReLU -----------------
    m = jnp.dot(mb, w1_ref[...], preferred_element_type=jnp.float32) + b1
    m = ln_relu(m, g1, be1)                                    # bf16

    # ---- integration_layer: Linear(2H -> H) on [text | m] + LayerNorm + ReLU
    # concat([text, m]) @ W2  ==  text @ W2[:H] + m @ W2[H:]
    z = (jnp.dot(tb, w2a_ref[...], preferred_element_type=jnp.float32)
         + jnp.dot(m, w2b_ref[...], preferred_element_type=jnp.float32)
         + b2)
    z = ln_relu(z, g2, be2)                                    # bf16

    # ---- output_layer: Linear(H -> H) ---------------------------------------
    out = jnp.dot(z, w3_ref[...], preferred_element_type=jnp.float32) + b3
    out_ref[...] = out.astype(out_ref.dtype)


def quantum_language_integration(text_emb, metrics, params, *,
                                 tile_b=256, out_dtype=jnp.bfloat16,
                                 bf16_tail=None):
    """text_emb: [B, H] f32 CLS embeddings (BERT stand-in); metrics: [B, M] f32."""
    B, H = text_emb.shape
    M = metrics.shape[-1]

    if bf16_tail is None:
        bf16_tail = _has_bf16_valu()

    # Batch tile: cap at 256 so v7x's two TensorCores both get several grid
    # steps at typical batch sizes, keep it a multiple of 8 when it doesn't
    # cover the whole batch, never exceed B. No jnp.pad: Pallas handles the
    # ragged last block (row-wise math; OOB output rows are dropped).
    tile_b = max(1, min(tile_b, B))
    if tile_b < B:
        tile_b = max(8, (tile_b // 8) * 8)
    grid = (pl.cdiv(B, tile_b),)

    # Weights -> bf16 once (tiny vs. the activation stream for real batches).
    w1 = params["w1"].astype(jnp.bfloat16)
    w2a = params["w2a"].astype(jnp.bfloat16)
    w2b = params["w2b"].astype(jnp.bfloat16)
    w3 = params["w3"].astype(jnp.bfloat16)

    # Pack the seven (1, H) f32 bias/gamma/beta vectors into one (8, H) operand.
    vecs = jnp.concatenate([
        params["b1"].reshape(1, H), params["g1"].reshape(1, H),
        params["be1"].reshape(1, H), params["b2"].reshape(1, H),
        params["g2"].reshape(1, H), params["be2"].reshape(1, H),
        params["b3"].reshape(1, H), jnp.zeros((1, H), jnp.float32),
    ], axis=0)

    # Right-sized VMEM budget: weights (<=2 buffers) + double-buffered f32
    # activation tiles + output tiles + f32 intermediates + margin, clamped to
    # 48 MiB (fits v7x's 64 MiB physical VMEM with headroom).
    out_isz = jnp.dtype(out_dtype).itemsize
    w_bytes = 2 * (M * H + 3 * H * H) + 4 * 8 * H
    act_bytes = 2 * tile_b * (H + M) * 4 + 2 * tile_b * H * out_isz
    scratch_bytes = 8 * tile_b * H * 4
    vmem_limit = int(min(48 << 20,
                         max(16 << 20,
                             2 * w_bytes + act_bytes + scratch_bytes + (4 << 20))))

    kernel = functools.partial(qli_kernel, bf16_tail=bool(bf16_tail))

    def run(single_buffer_weights):
        def wspec(shape):
            idx = lambda i: (0,) * len(shape)
            if single_buffer_weights:
                # Constant index_map -> resident weights; single-buffer them so
                # VMEM isn't spent on a dead second copy (matters on v7x).
                return pl.BlockSpec(shape, idx, pipeline_mode=pl.Buffered(1))
            return pl.BlockSpec(shape, idx)

        return pl.pallas_call(
            kernel,
            out_shape=jax.ShapeDtypeStruct((B, H), out_dtype),
            grid=grid,
            in_specs=[
                # Streamed f32 activations (double-buffered across the grid).
                pl.BlockSpec((tile_b, H), lambda i: (i, 0)),
                # Note: M is tiny (8) today; if it grows, pad it to a multiple
                # of 128 at init for MXU-K / lane-density.
                pl.BlockSpec((tile_b, M), lambda i: (i, 0)),
                # Resident weights (constant index_map).
                wspec((M, H)), wspec((H, H)), wspec((H, H)), wspec((H, H)),
                wspec((8, H)),
            ],
            out_specs=pl.BlockSpec((tile_b, H), lambda i: (i, 0)),
            compiler_params=pltpu.CompilerParams(
                dimension_semantics=("parallel",),
                vmem_limit_bytes=vmem_limit,
            ),
        )(text_emb, metrics, w1, w2a, w2b, w3, vecs)

    try:
        return run(single_buffer_weights=True)
    except Exception:
        # pipeline_mode=pl.Buffered(1) not supported on this jax version/path;
        # fall back to default double-buffering (identical results).
        return run(single_buffer_weights=False)


def init_params(key, hidden_size, num_metrics):
    ks = jax.random.split(key, 6)
    scale = 0.02
    H, M = hidden_size, num_metrics
    return {
        # metrics_encoder Linear(M -> H) + LayerNorm(H)
        "w1": scale * jax.random.normal(ks[0], (M, H), jnp.float32),
        "b1": jnp.zeros((1, H), jnp.float32),
        "g1": jnp.ones((1, H), jnp.float32),
        "be1": jnp.zeros((1, H), jnp.float32),
        # integration Linear(2H -> H) split into text / metrics halves + LN(H)
        "w2a": scale * jax.random.normal(ks[1], (H, H), jnp.float32),
        "w2b": scale * jax.random.normal(ks[2], (H, H), jnp.float32),
        "b2": jnp.zeros((1, H), jnp.float32),
        "g2": jnp.ones((1, H), jnp.float32),
        "be2": jnp.zeros((1, H), jnp.float32),
        # output Linear(H -> H)
        "w3": scale * jax.random.normal(ks[3], (H, H), jnp.float32),
        "b3": jnp.zeros((1, H), jnp.float32),
    }


def reference(text_emb, metrics, p):
    """Pure-JAX f32 reference for a sanity check."""
    eps = 1e-5

    def ln(x, g, b):
        mu = jnp.mean(x, axis=-1, keepdims=True)
        var = jnp.mean((x - mu) ** 2, axis=-1, keepdims=True)
        return (x - mu) * jax.lax.rsqrt(var + eps) * g + b

    m = jnp.maximum(ln(metrics @ p["w1"] + p["b1"], p["g1"], p["be1"]), 0.0)
    combined = jnp.concatenate([text_emb, m], axis=-1)
    w2 = jnp.concatenate([p["w2a"], p["w2b"]], axis=0)
    z = jnp.maximum(ln(combined @ w2 + p["b2"], p["g2"], p["be2"]), 0.0)
    return z @ p["w3"] + p["b3"]


if __name__ == "__main__":
    B, H, M = 2, 32, 8   # small shapes consistent with the module
    key = jax.random.PRNGKey(0)
    k_text, k_metrics, k_params = jax.random.split(key, 3)

    # TODO(synk): pretrained BERT tokenizer + language model have no Pallas
    # equivalent; dense CLS embeddings stand in for the frozen text encoder.
    text_emb = jax.random.normal(k_text, (B, H), jnp.float32)
    metrics = jax.random.normal(k_metrics, (B, M), jnp.float32)
    params = init_params(k_params, H, M)

    out = quantum_language_integration(text_emb, metrics, params)
    out = jax.block_until_ready(out)

    ref = reference(text_emb, metrics, params)
    assert out.shape == (B, H)
    # Tolerance relaxed vs. the f32 reference: matmuls run in bf16 on the MXU
    # and the output is emitted in bf16 (f32 accumulation + f32 LayerNorm
    # statistics preserved inside the kernel).
    assert jnp.allclose(out.astype(jnp.float32), ref, atol=3e-2, rtol=3e-2), \
        "mismatch vs reference"
    print("KERNEL_OK")
</pallas_src>

<mosaic_0001>
module attributes {stable_mosaic.version = 11 : i64} {
  func.func @qli_kernel(%arg0: i32, %arg1: memref<2x32xf32, #tpu.memory_space<vmem>>, %arg2: memref<2x8xf32, #tpu.memory_space<vmem>>, %arg3: memref<8x32xbf16, #tpu.memory_space<vmem>>, %arg4: memref<32x32xbf16, #tpu.memory_space<vmem>>, %arg5: memref<32x32xbf16, #tpu.memory_space<vmem>>, %arg6: memref<32x32xbf16, #tpu.memory_space<vmem>>, %arg7: memref<8x32xf32, #tpu.memory_space<vmem>>, %arg8: memref<2x32xbf16, #tpu.memory_space<vmem>>) attributes {dimension_semantics = [#tpu.dimension_semantics<parallel>], iteration_bounds = array<i64: 1>, scalar_prefetch = 0 : i64, scratch_operands = 0 : i64, tpu.core_type = #tpu.core_type<tc>, window_params = [{transform_indices = @transform_0, window_bounds = array<i64: 2, 32>}, {transform_indices = @transform_1, window_bounds = array<i64: 2, 8>}, {pipeline_mode = #tpu.pipeline_mode<synchronous>, transform_indices = @transform_2, window_bounds = array<i64: 8, 32>}, {pipeline_mode = #tpu.pipeline_mode<synchronous>, transform_indices = @transform_3, window_bounds = array<i64: 32, 32>}, {pipeline_mode = #tpu.pipeline_mode<synchronous>, transform_indices = @transform_4, window_bounds = array<i64: 32, 32>}, {pipeline_mode = #tpu.pipeline_mode<synchronous>, transform_indices = @transform_5, window_bounds = array<i64: 32, 32>}, {pipeline_mode = #tpu.pipeline_mode<synchronous>, transform_indices = @transform_6, window_bounds = array<i64: 8, 32>}, {transform_indices = @transform_7, window_bounds = array<i64: 2, 32>}]} {
    %c0 = arith.constant 0 : index
    %c0_0 = arith.constant 0 : index
    %0 = vector.load %arg7[%c0, %c0_0] : memref<8x32xf32, #tpu.memory_space<vmem>>, vector<8x32xf32>
    %1 = vector.extract_strided_slice %0 {offsets = [0, 0], sizes = [1, 32], strides = [1, 1]} : vector<8x32xf32> to vector<1x32xf32>
    %2 = vector.extract_strided_slice %0 {offsets = [1, 0], sizes = [1, 32], strides = [1, 1]} : vector<8x32xf32> to vector<1x32xf32>
    %3 = vector.extract_strided_slice %0 {offsets = [2, 0], sizes = [1, 32], strides = [1, 1]} : vector<8x32xf32> to vector<1x32xf32>
    %4 = vector.extract_strided_slice %0 {offsets = [3, 0], sizes = [1, 32], strides = [1, 1]} : vector<8x32xf32> to vector<1x32xf32>
    %5 = vector.extract_strided_slice %0 {offsets = [4, 0], sizes = [1, 32], strides = [1, 1]} : vector<8x32xf32> to vector<1x32xf32>
    %6 = vector.extract_strided_slice %0 {offsets = [5, 0], sizes = [1, 32], strides = [1, 1]} : vector<8x32xf32> to vector<1x32xf32>
    %7 = vector.extract_strided_slice %0 {offsets = [6, 0], sizes = [1, 32], strides = [1, 1]} : vector<8x32xf32> to vector<1x32xf32>
    %c0_1 = arith.constant 0 : index
    %c0_2 = arith.constant 0 : index
    %8 = vector.load %arg1[%c0_1, %c0_2] : memref<2x32xf32, #tpu.memory_space<vmem>>, vector<2x32xf32>
    %9 = arith.truncf %8 : vector<2x32xf32> to vector<2x32xbf16>
    %c0_3 = arith.constant 0 : index
    %c0_4 = arith.constant 0 : index
    %10 = vector.load %arg2[%c0_3, %c0_4] : memref<2x8xf32, #tpu.memory_space<vmem>>, vector<2x8xf32>
    %11 = arith.truncf %10 : vector<2x8xf32> to vector<2x8xbf16>
    %c0_5 = arith.constant 0 : index
    %c0_6 = arith.constant 0 : index
    %12 = vector.load %arg3[%c0_5, %c0_6] : memref<8x32xbf16, #tpu.memory_space<vmem>>, vector<8x32xbf16>
    %cst = arith.constant dense<0.000000e+00> : vector<2x32xf32>
    %13 = tpu.matmul %11, %12, %cst {dimension_numbers = #tpu.dot_dimension_numbers<[1], [0], [0], [1], [0, 0, 1, 1], [], []>} : vector<2x8xbf16>, vector<8x32xbf16>, vector<2x32xf32> -> vector<2x32xf32>
    %14 = vector.broadcast %1 : vector<1x32xf32> to vector<2x32xf32>
    %15 = arith.addf %13, %14 : vector<2x32xf32>
    %cst_7 = arith.constant dense<0.000000e+00> : vector<2xf32>
    %16 = vector.multi_reduction <add>, %15, %cst_7 [1] : vector<2x32xf32> to vector<2xf32>
    %17 = vector.shape_cast %16 : vector<2xf32> to vector<2x1xf32>
    %18 = arith.mulf %15, %15 : vector<2x32xf32>
    %cst_8 = arith.constant dense<0.000000e+00> : vector<2xf32>
    %19 = vector.multi_reduction <add>, %18, %cst_8 [1] : vector<2x32xf32> to vector<2xf32>
    %20 = vector.shape_cast %19 : vector<2xf32> to vector<2x1xf32>
    %cst_9 = arith.constant 3.125000e-02 : f32
    %21 = vector.broadcast %cst_9 : f32 to vector<2x1xf32>
    %22 = arith.mulf %17, %21 : vector<2x1xf32>
    %cst_10 = arith.constant 3.125000e-02 : f32
    %23 = vector.broadcast %cst_10 : f32 to vector<2x1xf32>
    %24 = arith.mulf %20, %23 : vector<2x1xf32>
    %25 = arith.mulf %22, %22 : vector<2x1xf32>
    %26 = arith.subf %24, %25 : vector<2x1xf32>
    %cst_11 = arith.constant 9.99999974E-6 : f32
    %27 = vector.broadcast %cst_11 : f32 to vector<2x1xf32>
    %28 = arith.addf %26, %27 : vector<2x1xf32>
    %29 = math.rsqrt %28 : vector<2x1xf32>
    %30 = arith.truncf %15 : vector<2x32xf32> to vector<2x32xbf16>
    %31 = arith.truncf %22 : vector<2x1xf32> to vector<2x1xbf16>
    %32 = vector.broadcast %31 : vector<2x1xbf16> to vector<2x32xbf16>
    %33 = arith.subf %30, %32 : vector<2x32xbf16>
    %34 = arith.truncf %29 : vector<2x1xf32> to vector<2x1xbf16>
    %35 = vector.broadcast %34 : vector<2x1xbf16> to vector<2x32xbf16>
    %36 = arith.mulf %33, %35 : vector<2x32xbf16>
    %37 = arith.truncf %2 : vector<1x32xf32> to vector<1x32xbf16>
    %38 = vector.broadcast %37 : vector<1x32xbf16> to vector<2x32xbf16>
    %39 = arith.mulf %36, %38 : vector<2x32xbf16>
    %40 = arith.truncf %3 : vector<1x32xf32> to vector<1x32xbf16>
    %41 = vector.broadcast %40 : vector<1x32xbf16> to vector<2x32xbf16>
    %42 = arith.addf %39, %41 : vector<2x32xbf16>
    %cst_12 = arith.constant 0.000000e+00 : bf16
    %43 = vector.broadcast %cst_12 : bf16 to vector<2x32xbf16>
    %44 = arith.maximumf %42, %43 : vector<2x32xbf16>
    %c0_13 = arith.constant 0 : index
    %c0_14 = arith.constant 0 : index
    %45 = vector.load %arg4[%c0_13, %c0_14] : memref<32x32xbf16, #tpu.memory_space<vmem>>, vector<32x32xbf16>
    %cst_15 = arith.constant dense<0.000000e+00> : vector<2x32xf32>
    %46 = tpu.matmul %9, %45, %cst_15 {dimension_numbers = #tpu.dot_dimension_numbers<[1], [0], [0], [1], [0, 0, 1, 1], [], []>} : vector<2x32xbf16>, vector<32x32xbf16>, vector<2x32xf32> -> vector<2x32xf32>
    %c0_16 = arith.constant 0 : index
    %c0_17 = arith.constant 0 : index
    %47 = vector.load %arg5[%c0_16, %c0_17] : memref<32x32xbf16, #tpu.memory_space<vmem>>, vector<32x32xbf16>
    %cst_18 = arith.constant dense<0.000000e+00> : vector<2x32xf32>
    %48 = tpu.matmul %44, %47, %cst_18 {dimension_numbers = #tpu.dot_dimension_numbers<[1], [0], [0], [1], [0, 0, 1, 1], [], []>} : vector<2x32xbf16>, vector<32x32xbf16>, vector<2x32xf32> -> vector<2x32xf32>
    %49 = arith.addf %46, %48 : vector<2x32xf32>
    %50 = vector.broadcast %4 : vector<1x32xf32> to vector<2x32xf32>
    %51 = arith.addf %49, %50 : vector<2x32xf32>
    %cst_19 = arith.constant dense<0.000000e+00> : vector<2xf32>
    %52 = vector.multi_reduction <add>, %51, %cst_19 [1] : vector<2x32xf32> to vector<2xf32>
    %53 = vector.shape_cast %52 : vector<2xf32> to vector<2x1xf32>
    %54 = arith.mulf %51, %51 : vector<2x32xf32>
    %cst_20 = arith.constant dense<0.000000e+00> : vector<2xf32>
    %55 = vector.multi_reduction <add>, %54, %cst_20 [1] : vector<2x32xf32> to vector<2xf32>
    %56 = vector.shape_cast %55 : vector<2xf32> to vector<2x1xf32>
    %cst_21 = arith.constant 3.125000e-02 : f32
    %57 = vector.broadcast %cst_21 : f32 to vector<2x1xf32>
    %58 = arith.mulf %53, %57 : vector<2x1xf32>
    %cst_22 = arith.constant 3.125000e-02 : f32
    %59 = vector.broadcast %cst_22 : f32 to vector<2x1xf32>
    %60 = arith.mulf %56, %59 : vector<2x1xf32>
    %61 = arith.mulf %58, %58 : vector<2x1xf32>
    %62 = arith.subf %60, %61 : vector<2x1xf32>
    %cst_23 = arith.constant 9.99999974E-6 : f32
    %63 = vector.broadcast %cst_23 : f32 to vector<2x1xf32>
    %64 = arith.addf %62, %63 : vector<2x1xf32>
    %65 = math.rsqrt %64 : vector<2x1xf32>
    %66 = arith.truncf %51 : vector<2x32xf32> to vector<2x32xbf16>
    %67 = arith.truncf %58 : vector<2x1xf32> to vector<2x1xbf16>
    %68 = vector.broadcast %67 : vector<2x1xbf16> to vector<2x32xbf16>
    %69 = arith.subf %66, %68 : vector<2x32xbf16>
    %70 = arith.truncf %65 : vector<2x1xf32> to vector<2x1xbf16>
    %71 = vector.broadcast %70 : vector<2x1xbf16> to vector<2x32xbf16>
    %72 = arith.mulf %69, %71 : vector<2x32xbf16>
    %73 = arith.truncf %5 : vector<1x32xf32> to vector<1x32xbf16>
    %74 = vector.broadcast %73 : vector<1x32xbf16> to vector<2x32xbf16>
    %75 = arith.mulf %72, %74 : vector<2x32xbf16>
    %76 = arith.truncf %6 : vector<1x32xf32> to vector<1x32xbf16>
    %77 = vector.broadcast %76 : vector<1x32xbf16> to vector<2x32xbf16>
    %78 = arith.addf %75, %77 : vector<2x32xbf16>
    %cst_24 = arith.constant 0.000000e+00 : bf16
    %79 = vector.broadcast %cst_24 : bf16 to vector<2x32xbf16>
    %80 = arith.maximumf %78, %79 : vector<2x32xbf16>
    %c0_25 = arith.constant 0 : index
    %c0_26 = arith.constant 0 : index
    %81 = vector.load %arg6[%c0_25, %c0_26] : memref<32x32xbf16, #tpu.memory_space<vmem>>, vector<32x32xbf16>
    %cst_27 = arith.constant dense<0.000000e+00> : vector<2x32xf32>
    %82 = tpu.matmul %80, %81, %cst_27 {dimension_numbers = #tpu.dot_dimension_numbers<[1], [0], [0], [1], [0, 0, 1, 1], [], []>} : vector<2x32xbf16>, vector<32x32xbf16>, vector<2x32xf32> -> vector<2x32xf32>
    %83 = vector.broadcast %7 : vector<1x32xf32> to vector<2x32xf32>
    %84 = arith.addf %82, %83 : vector<2x32xf32>
    %85 = arith.truncf %84 : vector<2x32xf32> to vector<2x32xbf16>
    %c0_28 = arith.constant 0 : index
    %c0_29 = arith.constant 0 : index
    %86 = vector.load %arg8[%c0_28, %c0_29] : memref<2x32xbf16, #tpu.memory_space<vmem>>, vector<2x32xbf16>
    tpu.vector_store %arg8[%c0_28, %c0_29], %85 {strides = array<i32>} : memref<2x32xbf16, #tpu.memory_space<vmem>>, vector<2x32xbf16>,
    return
  }
  func.func @transform_0(%arg0: i32) -> (i32, i32) {
    %c0_i32 = arith.constant 0 : i32
    %c0_i32_0 = arith.constant 0 : i32
    return %arg0, %c0_i32 : i32, i32
  }
  func.func @transform_1(%arg0: i32) -> (i32, i32) {
    %c0_i32 = arith.constant 0 : i32
    %c0_i32_0 = arith.constant 0 : i32
    return %arg0, %c0_i32 : i32, i32
  }
  func.func @transform_2(%arg0: i32) -> (i32, i32) {
    %c0_i32 = arith.constant 0 : i32
    %c0_i32_0 = arith.constant 0 : i32
    %c0_i32_1 = arith.constant 0 : i32
    return %c0_i32, %c0_i32_0 : i32, i32
  }
  func.func @transform_3(%arg0: i32) -> (i32, i32) {
    %c0_i32 = arith.constant 0 : i32
    %c0_i32_0 = arith.constant 0 : i32
    %c0_i32_1 = arith.constant 0 : i32
    return %c0_i32, %c0_i32_0 : i32, i32
  }
  func.func @transform_4(%arg0: i32) -> (i32, i32) {
    %c0_i32 = arith.constant 0 : i32
    %c0_i32_0 = arith.constant 0 : i32
    %c0_i32_1 = arith.constant 0 : i32
    return %c0_i32, %c0_i32_0 : i32, i32
  }
  func.func @transform_5(%arg0: i32) -> (i32, i32) {
    %c0_i32 = arith.constant 0 : i32
    %c0_i32_0 = arith.constant 0 : i32
    %c0_i32_1 = arith.constant 0 : i32
    return %c0_i32, %c0_i32_0 : i32, i32
  }
  func.func @transform_6(%arg0: i32) -> (i32, i32) {
    %c0_i32 = arith.constant 0 : i32
    %c0_i32_0 = arith.constant 0 : i32
    %c0_i32_1 = arith.constant 0 : i32
    return %c0_i32, %c0_i32_0 : i32, i32
  }
  func.func @transform_7(%arg0: i32) -> (i32, i32) {
    %c0_i32 = arith.constant 0 : i32
    %c0_i32_0 = arith.constant 0 : i32
    return %arg0, %c0_i32 : i32, i32
  }
}

module attributes {stable_mosaic.version = 11 : i64} {
  func.func @qli_kernel(%arg0: i32, %arg1: memref<2x32xf32, #tpu.memory_space<vmem>>, %arg2: memref<2x8xf32, #tpu.memory_space<vmem>>, %arg3: memref<8x32xbf16, #tpu.memory_space<vmem>>, %arg4: memref<32x32xbf16, #tpu.memory_space<vmem>>, %arg5: memref<32x32xbf16, #tpu.memory_space<vmem>>, %arg6: memref<32x32xbf16, #tpu.memory_space<vmem>>, %arg7: memref<8x32xf32, #tpu.memory_space<vmem>>, %arg8: memref<2x32xbf16, #tpu.memory_space<vmem>>) attributes {dimension_semantics = [#tpu.dimension_semantics<parallel>], iteration_bounds = array<i64: 1>, scalar_prefetch = 0 : i64, scratch_operands = 0 : i64, tpu.core_type = #tpu.core_type<tc>, window_params = [{transform_indices = @transform_0, window_bounds = array<i64: 2, 32>}, {transform_indices = @transform_1, window_bounds = array<i64: 2, 8>}, {pipeline_mode = #tpu.pipeline_mode<synchronous>, transform_indices = @transform_2, window_bounds = array<i64: 8, 32>}, {pipeline_mode = #tpu.pipeline_mode<synchronous>, transform_indices = @transform_3, window_bounds = array<i64: 32, 32>}, {pipeline_mode = #tpu.pipeline_mode<synchronous>, transform_indices = @transform_4, window_bounds = array<i64: 32, 32>}, {pipeline_mode = #tpu.pipeline_mode<synchronous>, transform_indices = @transform_5, window_bounds = array<i64: 32, 32>}, {pipeline_mode = #tpu.pipeline_mode<synchronous>, transform_indices = @transform_6, window_bounds = array<i64: 8, 32>}, {transform_indices = @transform_7, window_bounds = array<i64: 2, 32>}]} {
    %c0 = arith.constant 0 : index
    %c0_0 = arith.constant 0 : index
    %0 = vector.load %arg7[%c0, %c0_0] : memref<8x32xf32, #tpu.memory_space<vmem>>, vector<8x32xf32>
    %1 = vector.extract_strided_slice %0 {offsets = [0, 0], sizes = [1, 32], strides = [1, 1]} : vector<8x32xf32> to vector<1x32xf32>
    %2 = vector.extract_strided_slice %0 {offsets = [1, 0], sizes = [1, 32], strides = [1, 1]} : vector<8x32xf32> to vector<1x32xf32>
    %3 = vector.extract_strided_slice %0 {offsets = [2, 0], sizes = [1, 32], strides = [1, 1]} : vector<8x32xf32> to vector<1x32xf32>
    %4 = vector.extract_strided_slice %0 {offsets = [3, 0], sizes = [1, 32], strides = [1, 1]} : vector<8x32xf32> to vector<1x32xf32>
    %5 = vector.extract_strided_slice %0 {offsets = [4, 0], sizes = [1, 32], strides = [1, 1]} : vector<8x32xf32> to vector<1x32xf32>
    %6 = vector.extract_strided_slice %0 {offsets = [5, 0], sizes = [1, 32], strides = [1, 1]} : vector<8x32xf32> to vector<1x32xf32>
    %7 = vector.extract_strided_slice %0 {offsets = [6, 0], sizes = [1, 32], strides = [1, 1]} : vector<8x32xf32> to vector<1x32xf32>
    %c0_1 = arith.constant 0 : index
    %c0_2 = arith.constant 0 : index
    %8 = vector.load %arg1[%c0_1, %c0_2] : memref<2x32xf32, #tpu.memory_space<vmem>>, vector<2x32xf32>
    %9 = arith.truncf %8 : vector<2x32xf32> to vector<2x32xbf16>
    %c0_3 = arith.constant 0 : index
    %c0_4 = arith.constant 0 : index
    %10 = vector.load %arg2[%c0_3, %c0_4] : memref<2x8xf32, #tpu.memory_space<vmem>>, vector<2x8xf32>
    %11 = arith.truncf %10 : vector<2x8xf32> to vector<2x8xbf16>
    %c0_5 = arith.constant 0 : index
    %c0_6 = arith.constant 0 : index
    %12 = vector.load %arg3[%c0_5, %c0_6] : memref<8x32xbf16, #tpu.memory_space<vmem>>, vector<8x32xbf16>
    %cst = arith.constant dense<0.000000e+00> : vector<2x32xf32>
    %13 = tpu.matmul %11, %12, %cst {dimension_numbers = #tpu.dot_dimension_numbers<[1], [0], [0], [1], [0, 0, 1, 1], [], []>} : vector<2x8xbf16>, vector<8x32xbf16>, vector<2x32xf32> -> vector<2x32xf32>
    %14 = vector.broadcast %1 : vector<1x32xf32> to vector<2x32xf32>
    %15 = arith.addf %13, %14 : vector<2x32xf32>
    %cst_7 = arith.constant dense<0.000000e+00> : vector<2xf32>
    %16 = vector.multi_reduction <add>, %15, %cst_7 [1] : vector<2x32xf32> to vector<2xf32>
    %17 = vector.shape_cast %16 : vector<2xf32> to vector<2x1xf32>
    %18 = arith.mulf %15, %15 : vector<2x32xf32>
    %cst_8 = arith.constant dense<0.000000e+00> : vector<2xf32>
    %19 = vector.multi_reduction <add>, %18, %cst_8 [1] : vector<2x32xf32> to vector<2xf32>
    %20 = vector.shape_cast %19 : vector<2xf32> to vector<2x1xf32>
    %cst_9 = arith.constant 3.125000e-02 : f32
    %21 = vector.broadcast %cst_9 : f32 to vector<2x1xf32>
    %22 = arith.mulf %17, %21 : vector<2x1xf32>
    %cst_10 = arith.constant 3.125000e-02 : f32
    %23 = vector.broadcast %cst_10 : f32 to vector<2x1xf32>
    %24 = arith.mulf %20, %23 : vector<2x1xf32>
    %25 = arith.mulf %22, %22 : vector<2x1xf32>
    %26 = arith.subf %24, %25 : vector<2x1xf32>
    %cst_11 = arith.constant 9.99999974E-6 : f32
    %27 = vector.broadcast %cst_11 : f32 to vector<2x1xf32>
    %28 = arith.addf %26, %27 : vector<2x1xf32>
    %29 = math.rsqrt %28 : vector<2x1xf32>
    %30 = arith.truncf %15 : vector<2x32xf32> to vector<2x32xbf16>
    %31 = arith.truncf %22 : vector<2x1xf32> to vector<2x1xbf16>
    %32 = vector.broadcast %31 : vector<2x1xbf16> to vector<2x32xbf16>
    %33 = arith.subf %30, %32 : vector<2x32xbf16>
    %34 = arith.truncf %29 : vector<2x1xf32> to vector<2x1xbf16>
    %35 = vector.broadcast %34 : vector<2x1xbf16> to vector<2x32xbf16>
    %36 = arith.mulf %33, %35 : vector<2x32xbf16>
    %37 = arith.truncf %2 : vector<1x32xf32> to vector<1x32xbf16>
    %38 = vector.broadcast %37 : vector<1x32xbf16> to vector<2x32xbf16>
    %39 = arith.mulf %36, %38 : vector<2x32xbf16>
    %40 = arith.truncf %3 : vector<1x32xf32> to vector<1x32xbf16>
    %41 = vector.broadcast %40 : vector<1x32xbf16> to vector<2x32xbf16>
    %42 = arith.addf %39, %41 : vector<2x32xbf16>
    %cst_12 = arith.constant 0.000000e+00 : bf16
    %43 = vector.broadcast %cst_12 : bf16 to vector<2x32xbf16>
    %44 = arith.maximumf %42, %43 : vector<2x32xbf16>
    %c0_13 = arith.constant 0 : index
    %c0_14 = arith.constant 0 : index
    %45 = vector.load %arg4[%c0_13, %c0_14] : memref<32x32xbf16, #tpu.memory_space<vmem>>, vector<32x32xbf16>
    %cst_15 = arith.constant dense<0.000000e+00> : vector<2x32xf32>
    %46 = tpu.matmul %9, %45, %cst_15 {dimension_numbers = #tpu.dot_dimension_numbers<[1], [0], [0], [1], [0, 0, 1, 1], [], []>} : vector<2x32xbf16>, vector<32x32xbf16>, vector<2x32xf32> -> vector<2x32xf32>
    %c0_16 = arith.constant 0 : index
    %c0_17 = arith.constant 0 : index
    %47 = vector.load %arg5[%c0_16, %c0_17] : memref<32x32xbf16, #tpu.memory_space<vmem>>, vector<32x32xbf16>
    %cst_18 = arith.constant dense<0.000000e+00> : vector<2x32xf32>
    %48 = tpu.matmul %44, %47, %cst_18 {dimension_numbers = #tpu.dot_dimension_numbers<[1], [0], [0], [1], [0, 0, 1, 1], [], []>} : vector<2x32xbf16>, vector<32x32xbf16>, vector<2x32xf32> -> vector<2x32xf32>
    %49 = arith.addf %46, %48 : vector<2x32xf32>
    %50 = vector.broadcast %4 : vector<1x32xf32> to vector<2x32xf32>
    %51 = arith.addf %49, %50 : vector<2x32xf32>
    %cst_19 = arith.constant dense<0.000000e+00> : vector<2xf32>
    %52 = vector.multi_reduction <add>, %51, %cst_19 [1] : vector<2x32xf32> to vector<2xf32>
    %53 = vector.shape_cast %52 : vector<2xf32> to vector<2x1xf32>
    %54 = arith.mulf %51, %51 : vector<2x32xf32>
    %cst_20 = arith.constant dense<0.000000e+00> : vector<2xf32>
    %55 = vector.multi_reduction <add>, %54, %cst_20 [1] : vector<2x32xf32> to vector<2xf32>
    %56 = vector.shape_cast %55 : vector<2xf32> to vector<2x1xf32>
    %cst_21 = arith.constant 3.125000e-02 : f32
    %57 = vector.broadcast %cst_21 : f32 to vector<2x1xf32>
    %58 = arith.mulf %53, %57 : vector<2x1xf32>
    %cst_22 = arith.constant 3.125000e-02 : f32
    %59 = vector.broadcast %cst_22 : f32 to vector<2x1xf32>
    %60 = arith.mulf %56, %59 : vector<2x1xf32>
    %61 = arith.mulf %58, %58 : vector<2x1xf32>
    %62 = arith.subf %60, %61 : vector<2x1xf32>
    %cst_23 = arith.constant 9.99999974E-6 : f32
    %63 = vector.broadcast %cst_23 : f32 to vector<2x1xf32>
    %64 = arith.addf %62, %63 : vector<2x1xf32>
    %65 = math.rsqrt %64 : vector<2x1xf32>
    %66 = arith.truncf %51 : vector<2x32xf32> to vector<2x32xbf16>
    %67 = arith.truncf %58 : vector<2x1xf32> to vector<2x1xbf16>
    %68 = vector.broadcast %67 : vector<2x1xbf16> to vector<2x32xbf16>
    %69 = arith.subf %66, %68 : vector<2x32xbf16>
    %70 = arith.truncf %65 : vector<2x1xf32> to vector<2x1xbf16>
    %71 = vector.broadcast %70 : vector<2x1xbf16> to vector<2x32xbf16>
    %72 = arith.mulf %69, %71 : vector<2x32xbf16>
    %73 = arith.truncf %5 : vector<1x32xf32> to vector<1x32xbf16>
    %74 = vector.broadcast %73 : vector<1x32xbf16> to vector<2x32xbf16>
    %75 = arith.mulf %72, %74 : vector<2x32xbf16>
    %76 = arith.truncf %6 : vector<1x32xf32> to vector<1x32xbf16>
    %77 = vector.broadcast %76 : vector<1x32xbf16> to vector<2x32xbf16>
    %78 = arith.addf %75, %77 : vector<2x32xbf16>
    %cst_24 = arith.constant 0.000000e+00 : bf16
    %79 = vector.broadcast %cst_24 : bf16 to vector<2x32xbf16>
    %80 = arith.maximumf %78, %79 : vector<2x32xbf16>
    %c0_25 = arith.constant 0 : index
    %c0_26 = arith.constant 0 : index
    %81 = vector.load %arg6[%c0_25, %c0_26] : memref<32x32xbf16, #tpu.memory_space<vmem>>, vector<32x32xbf16>
    %cst_27 = arith.constant dense<0.000000e+00> : vector<2x32xf32>
    %82 = tpu.matmul %80, %81, %cst_27 {dimension_numbers = #tpu.dot_dimension_numbers<[1], [0], [0], [1], [0, 0, 1, 1], [], []>} : vector<2x32xbf16>, vector<32x32xbf16>, vector<2x32xf32> -> vector<2x32xf32>
    %83 = vector.broadcast %7 : vector<1x32xf32> to vector<2x32xf32>
    %84 = arith.addf %82, %83 : vector<2x32xf32>
    %85 = arith.truncf %84 : vector<2x32xf32> to vector<2x32xbf16>
    %c0_28 = arith.constant 0 : index
    %c0_29 = arith.constant 0 : index
    %86 = vector.load %arg8[%c0_28, %c0_29] : memref<2x32xbf16, #tpu.memory_space<vmem>>, vector<2x32xbf16>
    tpu.vector_store %arg8[%c0_28, %c0_29], %85 {strides = array<i32>} : memref<2x32xbf16, #tpu.memory_space<vmem>>, vector<2x32xbf16>,
    return
  }
  func.func @transform_0(%arg0: i32) -> (i32, i32) {
    %c0_i32 = arith.constant 0 : i32
    %c0_i32_0 = arith.constant 0 : i32
    return %arg0, %c0_i32 : i32, i32
  }
  func.func @transform_1(%arg0: i32) -> (i32, i32) {
    %c0_i32 = arith.constant 0 : i32
    %c0_i32_0 = arith.constant 0 : i32
    return %arg0, %c0_i32 : i32, i32
  }
  func.func @transform_2(%arg0: i32) -> (i32, i32) {
    %c0_i32 = arith.constant 0 : i32
    %c0_i32_0 = arith.constant 0 : i32
    %c0_i32_1 = arith.constant 0 : i32
    return %c0_i32, %c0_i32_0 : i32, i32
  }
  func.func @transform_3(%arg0: i32) -> (i32, i32) {
    %c0_i32 = arith.constant 0 : i32
    %c0_i32_0 = arith.constant 0 : i32
    %c0_i32_1 = arith.constant 0 : i32
    return %c0_i32, %c0_i32_0 : i32, i32
  }
  func.func @transform_4(%arg0: i32) -> (i32, i32) {
    %c0_i32 = arith.constant 0 : i32
    %c0_i32_0 = arith.constant 0 : i32
    %c0_i32_1 = arith.constant 0 : i32
    return %c0_i32, %c0_i32_0 : i32, i32
  }
  func.func @transform_5(%arg0: i32) -> (i32, i32) {
    %c0_i32 = arith.constant 0 : i32
    %c0_i32_0 = arith.constant 0 : i32
    %c0_i32_1 = arith.constant 0 : i32
    return %c0_i32, %c0_i32_0 : i32, i32
  }
  func.func @transform_6(%arg0: i32) -> (i32, i32) {
    %c0_i32 = arith.constant 0 : i32
    %c0_i32_0 = arith.constant 0 : i32
    %c0_i32_1 = arith.constant 0 : i32
    return %c0_i32, %c0_i32_0 : i32, i32
  }
  func.func @transform_7(%arg0: i32) -> (i32, i32) {
    %c0_i32 = arith.constant 0 : i32
    %c0_i32_0 = arith.constant 0 : i32
    return %arg0, %c0_i32 : i32, i32
  }
}

</mosaic_0001>

<llo_original>
// kernel: tpu_custom_call.1
$region0: #{tpu_custom_call.1}
  #allocation0 [shape = 'u32[]', space=smem, size = 0x4, offset = 0x4, fixed_abs, tag = 'smem constant byte address 0x4 - core index']
  #allocation1 [shape = 'u32[144,128]{1,0:T(1,128)}', space=vmem, size = 0x12000, scoped, tag = 'internal scratch']
  %s0 = inlined_call_operand.hbm [shape: f32[2,32], index: 0, kind: input, shape index: {}]
  %s1 = inlined_call_operand.vmem [shape: f32[2,8], index: 1, kind: input, shape index: {}]
  %s2 = inlined_call_operand.hbm [shape: bf16[8,32], index: 2, kind: input, shape index: {}]
  %s3 = inlined_call_operand.hbm [shape: bf16[32,32], index: 3, kind: input, shape index: {}]
  %s4 = inlined_call_operand.hbm [shape: bf16[32,32], index: 4, kind: input, shape index: {}]
  %s5 = inlined_call_operand.vmem [shape: bf16[32,32], index: 5, kind: input, shape index: {}]
  %s6 = inlined_call_operand.hbm [shape: f32[8,32], index: 6, kind: input, shape index: {}]
  %s7 = inlined_call_operand.hbm [shape: bf16[2,32], index: 7, kind: output, shape index: {}]
  %s8 = sld [smem:[#allocation0]]
  $region58: #{tpu_custom_call.1} parent=0
    _
  %s10 = ssub.s32 1, %s8
  %s11 = scalar_select 0, %s10, %s8
  $region1: #{tpu_custom_call.1} parent=0
    #allocation2 [shape = 'u8[1024]{0}', space=vmem, size = 0x400, scoped, tag = 'input window, operand 0, single buffered']
    #allocation3 [shape = 's32[1]{0}', space=sflag, size = 0x4, scoped, tag = 'scoped memory for tpu_custom_call.1']
    #allocation4 [shape = 's32[1]{0}', space=sflag, size = 0x4, scoped, tag = 'scoped memory for tpu_custom_call.1']
    #allocation5 [shape = 'u8[2048]{0}', space=vmem, size = 0x800, scoped, tag = 'input window, operand 2, single buffered']
    #allocation6 [shape = 's32[1]{0}', space=sflag, size = 0x4, scoped, tag = 'scoped memory for tpu_custom_call.1']
    #allocation7 [shape = 'u8[8192]{0}', space=vmem, size = 0x2000, scoped, tag = 'input window, operand 3, single buffered']
    #allocation8 [shape = 'u8[8192]{0}', space=vmem, size = 0x2000, scoped, tag = 'input window, operand 4, single buffered']
    #allocation9 [shape = 's32[1]{0}', space=sflag, size = 0x4, scoped, tag = 'scoped memory for tpu_custom_call.1']
    #allocation10 [shape = 'u8[4096]{0}', space=vmem, size = 0x1000, scoped, tag = 'input window, operand 6, single buffered']
    #allocation11 [shape = 'u8[512]{0}', space=vmem, size = 0x400, scoped, tag = 'output window, operand 0, single buffered']
    %12 = vsyncpa [#allocation3], 0
    %13 = vsyncpa [#allocation6], 0
    %14 = vsyncpa [#allocation9], 0
    %15 = vsyncpa [#allocation4], 0
    // Predicated region
    $region2: #{tpu_custom_call.1} parent=1 // pred_check
      _
    $region3: #{tpu_custom_call.1} parent=1 // pred_check_branch
      %17 = sbr.rel (0) target = $region5
    $region4: #{tpu_custom_call.1} parent=1 // pred_region
      %s19 = ssub.s32 32, 32
      %20 = vsyncadd [#allocation3], %s19
      %s22 = sshll.u32 [#allocation2], 4
      %s23 = int_to_ptr.vmem [resolvable:$true] %s22
      %25 = dma.hbm_to_vmem [thread:$0]  %s0, 32, %s23, [#allocation3]
    $region5: #{tpu_custom_call.1} parent=1 // pred_fallthru
      _
    // Predicated region
    $region6: #{tpu_custom_call.1} parent=1 // pred_check
      _
    $region7: #{tpu_custom_call.1} parent=1 // pred_check_branch
      %27 = sbr.rel (0) target = $region9
    $region8: #{tpu_custom_call.1} parent=1 // pred_region
      _
    $region9: #{tpu_custom_call.1} parent=1 // pred_fallthru
      _
    // Predicated region
    $region10: #{tpu_custom_call.1} parent=1 // pred_check
      _
    $region11: #{tpu_custom_call.1} parent=1 // pred_check_branch
      %29 = sbr.rel (0) target = $region13
    $region12: #{tpu_custom_call.1} parent=1 // pred_region
      %s31 = ssub.s32 64, 64
      %32 = vsyncadd [#allocation6], %s31
      %s34 = sshll.u32 [#allocation5], 4
      %s35 = int_to_ptr.vmem [resolvable:$true] %s34
      %37 = dma.hbm_to_vmem [thread:$0]  %s2, 64, %s35, [#allocation6]
    $region13: #{tpu_custom_call.1} parent=1 // pred_fallthru
      _
    // Predicated region
    $region14: #{tpu_custom_call.1} parent=1 // pred_check
      _
    $region15: #{tpu_custom_call.1} parent=1 // pred_check_branch
      %39 = sbr.rel (0) target = $region17
    $region16: #{tpu_custom_call.1} parent=1 // pred_region
      %s41 = ssub.s32 256, 256
      %42 = vsyncadd [#allocation6], %s41
      %s43 = sshll.u32 [#allocation7], 4
      %s44 = int_to_ptr.vmem [resolvable:$true] %s43
      %49 = dma.hbm_to_vmem [thread:$0]  %s3, 256, %s44, [#allocation6], 64, 64, 4
    $region17: #{tpu_custom_call.1} parent=1 // pred_fallthru
      _
    // Predicated region
    $region18: #{tpu_custom_call.1} parent=1 // pred_check
      _
    $region19: #{tpu_custom_call.1} parent=1 // pred_check_branch
      %51 = sbr.rel (0) target = $region21
    $region20: #{tpu_custom_call.1} parent=1 // pred_region
      %s53 = ssub.s32 256, 256
      %54 = vsyncadd [#allocation9], %s53
      %s55 = sshll.u32 [#allocation8], 4
      %s56 = int_to_ptr.vmem [resolvable:$true] %s55
      %61 = dma.hbm_to_vmem [thread:$0]  %s4, 256, %s56, [#allocation9], 64, 64, 4
    $region21: #{tpu_custom_call.1} parent=1 // pred_fallthru
      _
    // Predicated region
    $region22: #{tpu_custom_call.1} parent=1 // pred_check
      _
    $region23: #{tpu_custom_call.1} parent=1 // pred_check_branch
      %63 = sbr.rel (0) target = $region25
    $region24: #{tpu_custom_call.1} parent=1 // pred_region
      _
    $region25: #{tpu_custom_call.1} parent=1 // pred_fallthru
      _
    // Predicated region
    $region26: #{tpu_custom_call.1} parent=1 // pred_check
      _
    $region27: #{tpu_custom_call.1} parent=1 // pred_check_branch
      %65 = sbr.rel (0) target = $region29
    $region28: #{tpu_custom_call.1} parent=1 // pred_region
      %s67 = ssub.s32 128, 128
      %68 = vsyncadd [#allocation9], %s67
      %s70 = sshll.u32 [#allocation10], 4
      %s71 = int_to_ptr.vmem [resolvable:$true] %s70
      %73 = dma.hbm_to_vmem [thread:$0]  %s6, 128, %s71, [#allocation9]
    $region29: #{tpu_custom_call.1} parent=1 // pred_fallthru
      _
    // Predicated region
    $region30: #{tpu_custom_call.1} parent=1 // pred_check
      _
    $region31: #{tpu_custom_call.1} parent=1 // pred_check_branch
      %75 = sbr.rel (0) target = $region33
    $region32: #{tpu_custom_call.1} parent=1 // pred_region
      %76 = dma.done [#allocation3], 32
    $region33: #{tpu_custom_call.1} parent=1 // pred_fallthru
      _
    // Predicated region
    $region34: #{tpu_custom_call.1} parent=1 // pred_check
      _
    $region35: #{tpu_custom_call.1} parent=1 // pred_check_branch
      %78 = sbr.rel (0) target = $region37
    $region36: #{tpu_custom_call.1} parent=1 // pred_region
      %79 = dma.done [#allocation6], 64
    $region37: #{tpu_custom_call.1} parent=1 // pred_fallthru
      _
    // Predicated region
    $region38: #{tpu_custom_call.1} parent=1 // pred_check
      _
    $region39: #{tpu_custom_call.1} parent=1 // pred_check_branch
      %81 = sbr.rel (0) target = $region41
    $region40: #{tpu_custom_call.1} parent=1 // pred_region
      %82 = dma.done [#allocation6], 256
    $region41: #{tpu_custom_call.1} parent=1 // pred_fallthru
      _
    // Predicated region
    $region42: #{tpu_custom_call.1} parent=1 // pred_check
      _
    $region43: #{tpu_custom_call.1} parent=1 // pred_check_branch
      %84 = sbr.rel (0) target = $region45
    $region44: #{tpu_custom_call.1} parent=1 // pred_region
      %85 = dma.done [#allocation9], 256
    $region45: #{tpu_custom_call.1} parent=1 // pred_fallthru
      _
    // Predicated region
    $region46: #{tpu_custom_call.1} parent=1 // pred_check
      _
    $region47: #{tpu_custom_call.1} parent=1 // pred_check_branch
      %87 = sbr.rel (0) target = $region49
    $region48: #{tpu_custom_call.1} parent=1 // pred_region
      %88 = dma.done [#allocation9], 128
    $region49: #{tpu_custom_call.1} parent=1 // pred_fallthru
      _
    %v90 = vld [vmem:[#allocation10] sm:$0xff]
    %v91 = vld [vmem:[#allocation2] sm:$0x3]
    %v92 = vpack.c.bf16 %v91, %v91
    %v93 = vld [vmem:[%s1] sm:$0x3]
    %v94 = vpack.c.bf16 %v93, %v93
    %v95 = vld [vmem:[#allocation5] sm:$0xf]
    %v96 = vlaneseq
    %v97 = vshrl.u32 %v96, 7
    %v98 = vsub.s32 0, %v97
    %v99 = vrot.slane %v90, %v98
    %vm100 = vcmask 64512
    %v102 = vsel %vm100, %v94, 0
    %vm104 = vcmask 1043456
    %v106 = vsel %vm104, %v95, 0
    %108 = vmatprep.subr.bf16.mxu0 0
    %109 = vmatpush1.bf16.msra.mxu0 %v106
    %110 = vmatprep.subr.bf16.mxu0 0
    %111 = vmatpush1.bf16.msra.mxu0 0
    %112 = vmatprep.subr.bf16.mxu0 0
    %113 = vmatpush1.bf16.msra.mxu0 0
    %114 = vmatprep.subr.bf16.mxu0 0
    %115 = vmatpush1.bf16.msra.mxu0 0
    %116 = vmatprep.subr.bf16.mxu0 0
    %117 = vmatpush1.bf16.msra.mxu0 0
    %118 = vmatprep.subr.bf16.mxu0 0
    %119 = vmatpush1.bf16.msra.mxu0 0
    %120 = vmatprep.subr.bf16.mxu0 0
    %121 = vmatpush1.bf16.msra.mxu0 0
    %122 = vmatprep.subr.bf16.mxu0 0
    %123 = vmatpush1.bf16.msra.mxu0 0
    %124 = vmatprep.subr.bf16.mxu0 0
    %125 = vmatpush1.bf16.msra.mxu0 0
    %126 = vmatprep.subr.bf16.mxu0 0
    %127 = vmatpush1.bf16.msra.mxu0 0
    %128 = vmatprep.subr.bf16.mxu0 0
    %129 = vmatpush1.bf16.msra.mxu0 0
    %130 = vmatprep.subr.bf16.mxu0 0
    %131 = vmatpush1.bf16.msra.mxu0 0
    %132 = vmatprep.subr.bf16.mxu0 0
    %133 = vmatpush1.bf16.msra.mxu0 0
    %134 = vmatprep.subr.bf16.mxu0 0
    %135 = vmatpush1.bf16.msra.mxu0 0
    %136 = vmatprep.subr.bf16.mxu0 0
    %137 = vmatpush1.bf16.msra.mxu0 0
    %138 = vmatprep.subr.bf16.mxu0 0
    %139 = vmatpush1.bf16.msra.mxu0 0
    %140 = vmatprep.mubr.bf16.mxu0 0
    %141 = vmatmul.mubr.bf16.gmra.mrb[0].mxu0 %v102
    %v142 = vpop.f32.mrb[0].mxu0
    %v143 = vadd.f32 %v99, %v142
    %v144 = vpop.f32.mrb[0].mxu0
    %v145 = vpop.f32.mrb[0].mxu0
    %v146 = vpop.f32.mrb[0].mxu0
    %147 = vdwg.mxu0
    %vm148 = vcmask 254976
    %v149 = vsel %vm148, %v143, 0.0
    %150 = vadd.xlane.f32.xlu0 %v149
    %v151 = vpop.xlane.xlu0 %150
    %v152 = vmul.f32 %v143, %v143
    %v153 = vsel %vm148, %v152, 0.0
    %154 = vadd.xlane.f32.xlu0 %v153
    %v155 = vpop.xlane.xlu0 %154
    %v156 = vmul.f32 %v151, 0.03125
    %v157 = vmul.f32 %v155, 0.03125
    %v158 = vmul.f32 %v156, %v156
    %v159 = vsub.f32 %v157, %v158
    %v160 = vadd.f32 %v159, 1e-05
    %v161 = vrsqrt.pop %v160
    %v162 = vpack.c.bf16 %v143, %v143
    %v163 = vpack.c.bf16 %v156, %v156
    %v164 = vsub.bf16 %v162, %v163
    %v165 = vpack.c.bf16 %v161, %v161
    %v166 = vmul.bf16 %v164, %v165
    %v167 = vpack.c.bf16 %v90, %v90
    %v169 = vshrl.u32 %v167, 16
    %v170 = vpack.i.b16 %v169, %v169
    %v172 = vlaneseq
    %v173 = vshrl.u32 %v172, 7
    %v174 = vsub.s32 0, %v173
    %v175 = vrot.slane %v170, %v174
    %v176 = vmul.bf16 %v166, %v175
    %v177 = vpack.i.b16 %v167, %v167
    %v179 = vlaneseq
    %v180 = vshrl.u32 %v179, 7
    %v181 = vsub.s32 1, %v180
    %v182 = vrot.slane %v177, %v181
    %v183 = vadd.bf16 %v176, %v182
    %v184 = vmax.bf16 %v183, 0
    %v185 = vld [vmem:[#allocation7] sm:$0xf]
    %v186 = vld [vmem:[#allocation7 + $0x4] sm:$0xf]
    %v187 = vld [vmem:[#allocation7 + $0x8] sm:$0xf]
    %v188 = vld [vmem:[#allocation7 + $0xc] sm:$0xf]
    %v189 = vld [vmem:[#allocation8] sm:$0xf]
    %v190 = vld [vmem:[#allocation8 + $0x4] sm:$0xf]
    %v191 = vld [vmem:[#allocation8 + $0x8] sm:$0xf]
    %v192 = vld [vmem:[#allocation8 + $0xc] sm:$0xf]
    %v197 = vunpack.c.l.b16 %v189
    %v198 = vunpack.c.l.b16 %v190
    %v199 = vunpack.c.l.b16 %v191
    %v200 = vunpack.c.l.b16 %v192
    %v201 = vpack.c.b16 %v198, %v197
    %v202 = vpack.c.b16 %v200, %v199
    %vm205 = vcmask 261120
    %v207 = vsel %vm205, %v184, 0
    %209 = vmatprep.subr.bf16.mxu0 0
    %210 = vmatpush1.bf16.msra.mxu0 %v201
    %211 = vmatprep.subr.bf16.mxu0 0
    %212 = vmatpush1.bf16.msra.mxu0 %v202
    %213 = vmatprep.subr.bf16.mxu0 0
    %214 = vmatpush1.bf16.msra.mxu0 0
    %215 = vmatprep.subr.bf16.mxu0 0
    %216 = vmatpush1.bf16.msra.mxu0 0
    %217 = vmatprep.subr.bf16.mxu0 0
    %218 = vmatpush1.bf16.msra.mxu0 0
    %219 = vmatprep.subr.bf16.mxu0 0
    %220 = vmatpush1.bf16.msra.mxu0 0
    %221 = vmatprep.subr.bf16.mxu0 0
    %222 = vmatpush1.bf16.msra.mxu0 0
    %223 = vmatprep.subr.bf16.mxu0 0
    %224 = vmatpush1.bf16.msra.mxu0 0
    %225 = vmatprep.subr.bf16.mxu0 0
    %226 = vmatpush1.bf16.msra.mxu0 0
    %227 = vmatprep.subr.bf16.mxu0 0
    %228 = vmatpush1.bf16.msra.mxu0 0
    %229 = vmatprep.subr.bf16.mxu0 0
    %230 = vmatpush1.bf16.msra.mxu0 0
    %231 = vmatprep.subr.bf16.mxu0 0
    %232 = vmatpush1.bf16.msra.mxu0 0
    %233 = vmatprep.subr.bf16.mxu0 0
    %234 = vmatpush1.bf16.msra.mxu0 0
    %235 = vmatprep.subr.bf16.mxu0 0
    %236 = vmatpush1.bf16.msra.mxu0 0
    %237 = vmatprep.subr.bf16.mxu0 0
    %238 = vmatpush1.bf16.msra.mxu0 0
    %239 = vmatprep.subr.bf16.mxu0 0
    %240 = vmatpush1.bf16.msra.mxu0 0
    %241 = vmatprep.mubr.bf16.mxu0 0
    %242 = vmatmul.mubr.bf16.gmra.mrb[0].mxu0 %v207
    %v243 = vpop.f32.mrb[0].mxu0
    %v244 = vadd.f32 0.0, %v243
    %v245 = vpop.f32.mrb[0].mxu0
    %v246 = vpop.f32.mrb[0].mxu0
    %v247 = vpop.f32.mrb[0].mxu0
    %248 = vdwg.mxu0
    %v253 = vunpack.c.l.b16 %v185
    %v254 = vunpack.c.l.b16 %v186
    %v255 = vunpack.c.l.b16 %v187
    %v256 = vunpack.c.l.b16 %v188
    %v257 = vpack.c.b16 %v254, %v253
    %v258 = vpack.c.b16 %v256, %v255
    %v262 = vsel %vm205, %v92, 0
    %264 = vmatprep.subr.bf16.mxu0 0
    %265 = vmatpush1.bf16.msra.mxu0 %v257
    %266 = vmatprep.subr.bf16.mxu0 0
    %267 = vmatpush1.bf16.msra.mxu0 %v258
    %268 = vmatprep.subr.bf16.mxu0 0
    %269 = vmatpush1.bf16.msra.mxu0 0
    %270 = vmatprep.subr.bf16.mxu0 0
    %271 = vmatpush1.bf16.msra.mxu0 0
    %272 = vmatprep.subr.bf16.mxu0 0
    %273 = vmatpush1.bf16.msra.mxu0 0
    %274 = vmatprep.subr.bf16.mxu0 0
    %275 = vmatpush1.bf16.msra.mxu0 0
    %276 = vmatprep.subr.bf16.mxu0 0
    %277 = vmatpush1.bf16.msra.mxu0 0
    %278 = vmatprep.subr.bf16.mxu0 0
    %279 = vmatpush1.bf16.msra.mxu0 0
    %280 = vmatprep.subr.bf16.mxu0 0
    %281 = vmatpush1.bf16.msra.mxu0 0
    %282 = vmatprep.subr.bf16.mxu0 0
    %283 = vmatpush1.bf16.msra.mxu0 0
    %284 = vmatprep.subr.bf16.mxu0 0
    %285 = vmatpush1.bf16.msra.mxu0 0
    %286 = vmatprep.subr.bf16.mxu0 0
    %287 = vmatpush1.bf16.msra.mxu0 0
    %288 = vmatprep.subr.bf16.mxu0 0
    %289 = vmatpush1.bf16.msra.mxu0 0
    %290 = vmatprep.subr.bf16.mxu0 0
    %291 = vmatpush1.bf16.msra.mxu0 0
    %292 = vmatprep.subr.bf16.mxu0 0
    %293 = vmatpush1.bf16.msra.mxu0 0
    %294 = vmatprep.subr.bf16.mxu0 0
    %295 = vmatpush1.bf16.msra.mxu0 0
    %296 = vmatprep.mubr.bf16.mxu0 0
    %297 = vmatmul.mubr.bf16.gmra.mrb[0].mxu0 %v262
    %v298 = vpop.f32.mrb[0].mxu0
    %v299 = vadd.f32 %v244, %v298
    %v300 = vpop.f32.mrb[0].mxu0
    %v301 = vpop.f32.mrb[0].mxu0
    %v302 = vpop.f32.mrb[0].mxu0
    %303 = vdwg.mxu0
    %v304 = vlaneseq
    %v305 = vshrl.u32 %v304, 7
    %v306 = vsub.s32 3, %v305
    %v307 = vrot.slane %v90, %v306
    %v308 = vadd.f32 %v299, %v307
    %v309 = vsel %vm148, %v308, 0.0
    %310 = vadd.xlane.f32.xlu0 %v309
    %v311 = vpop.xlane.xlu0 %310
    %v312 = vmul.f32 %v308, %v308
    %v313 = vsel %vm148, %v312, 0.0
    %314 = vadd.xlane.f32.xlu0 %v313
    %v315 = vpop.xlane.xlu0 %314
    %v316 = vmul.f32 %v311, 0.03125
    %v317 = vmul.f32 %v315, 0.03125
    %v318 = vmul.f32 %v316, %v316
    %v319 = vsub.f32 %v317, %v318
    %v320 = vadd.f32 %v319, 1e-05
    %v321 = vrsqrt.pop %v320
    %v322 = vpack.c.bf16 %v308, %v308
    %v323 = vpack.c.bf16 %v316, %v316
    %v324 = vsub.bf16 %v322, %v323
    %v325 = vpack.c.bf16 %v321, %v321
    %v326 = vmul.bf16 %v324, %v325
    %v327 = vlaneseq
    %v328 = vshrl.u32 %v327, 7
    %v329 = vsub.s32 2, %v328
    %v330 = vrot.slane %v177, %v329
    %v331 = vmul.bf16 %v326, %v330
    %v332 = vlaneseq
    %v333 = vshrl.u32 %v332, 7
    %v334 = vsub.s32 2, %v333
    %v335 = vrot.slane %v170, %v334
    %v336 = vadd.bf16 %v331, %v335
    %v337 = vmax.bf16 %v336, 0
    %v338 = vld [vmem:[%s5] sm:$0xf]
    %v339 = vld [vmem:[%s5 + $0x4] sm:$0xf]
    %v340 = vld [vmem:[%s5 + $0x8] sm:$0xf]
    %v341 = vld [vmem:[%s5 + $0xc] sm:$0xf]
    %v342 = vlaneseq
    %v343 = vshrl.u32 %v342, 7
    %v344 = vsub.s32 6, %v343
    %v345 = vrot.slane %v90, %v344
    %v350 = vunpack.c.l.b16 %v338
    %v351 = vunpack.c.l.b16 %v339
    %v352 = vunpack.c.l.b16 %v340
    %v353 = vunpack.c.l.b16 %v341
    %v354 = vpack.c.b16 %v351, %v350
    %v355 = vpack.c.b16 %v353, %v352
    %v359 = vsel %vm205, %v337, 0
    %361 = vmatprep.subr.bf16.mxu0 0
    %362 = vmatpush1.bf16.msra.mxu0 %v354
    %363 = vmatprep.subr.bf16.mxu0 0
    %364 = vmatpush1.bf16.msra.mxu0 %v355
    %365 = vmatprep.subr.bf16.mxu0 0
    %366 = vmatpush1.bf16.msra.mxu0 0
    %367 = vmatprep.subr.bf16.mxu0 0
    %368 = vmatpush1.bf16.msra.mxu0 0
    %369 = vmatprep.subr.bf16.mxu0 0
    %370 = vmatpush1.bf16.msra.mxu0 0
    %371 = vmatprep.subr.bf16.mxu0 0
    %372 = vmatpush1.bf16.msra.mxu0 0
    %373 = vmatprep.subr.bf16.mxu0 0
    %374 = vmatpush1.bf16.msra.mxu0 0
    %375 = vmatprep.subr.bf16.mxu0 0
    %376 = vmatpush1.bf16.msra.mxu0 0
    %377 = vmatprep.subr.bf16.mxu0 0
    %378 = vmatpush1.bf16.msra.mxu0 0
    %379 = vmatprep.subr.bf16.mxu0 0
    %380 = vmatpush1.bf16.msra.mxu0 0
    %381 = vmatprep.subr.bf16.mxu0 0
    %382 = vmatpush1.bf16.msra.mxu0 0
    %383 = vmatprep.subr.bf16.mxu0 0
    %384 = vmatpush1.bf16.msra.mxu0 0
    %385 = vmatprep.subr.bf16.mxu0 0
    %386 = vmatpush1.bf16.msra.mxu0 0
    %387 = vmatprep.subr.bf16.mxu0 0
    %388 = vmatpush1.bf16.msra.mxu0 0
    %389 = vmatprep.subr.bf16.mxu0 0
    %390 = vmatpush1.bf16.msra.mxu0 0
    %391 = vmatprep.subr.bf16.mxu0 0
    %392 = vmatpush1.bf16.msra.mxu0 0
    %393 = vmatprep.mubr.bf16.mxu0 0
    %394 = vmatmul.mubr.bf16.gmra.mrb[0].mxu0 %v359
    %v395 = vpop.f32.mrb[0].mxu0
    %v396 = vadd.f32 %v345, %v395
    %v397 = vpop.f32.mrb[0].mxu0
    %v398 = vpop.f32.mrb[0].mxu0
    %v399 = vpop.f32.mrb[0].mxu0
    %400 = vdwg.mxu0
    %v401 = vpack.c.bf16 %v396, %v396
    %vm402 = vcmask 253952
    %403 = vst.msk [vmem:[#allocation11] sm:$0x1] %vm402, %v401
    // Predicated region
    $region50: #{tpu_custom_call.1} parent=1 // pred_check
      _
    $region51: #{tpu_custom_call.1} parent=1 // pred_check_branch
      %405 = sbr.rel (0) target = $region53
    $region52: #{tpu_custom_call.1} parent=1 // pred_region
      %s407 = ssub.s32 16, 16
      %408 = vsyncadd [#allocation4], %s407
      %s410 = sshll.u32 [#allocation11], 4
      %s411 = int_to_ptr.vmem [resolvable:$true] %s410
      %413 = dma.vmem_to_hbm [thread:$0]  %s411, 16, %s7, [#allocation4]
    $region53: #{tpu_custom_call.1} parent=1 // pred_fallthru
      _
    // Predicated region
    $region54: #{tpu_custom_call.1} parent=1 // pred_check
      _
    $region55: #{tpu_custom_call.1} parent=1 // pred_check_branch
      %415 = sbr.rel (0) target = $region57
    $region56: #{tpu_custom_call.1} parent=1 // pred_region
      %416 = dma.done [#allocation4], 16
    $region57: #{tpu_custom_call.1} parent=1 // pred_fallthru
      _
    %417 = vsyncpa [#allocation3], 1
    %418 = vsyncpa [#allocation6], 1
    %419 = vsyncpa [#allocation9], 1
    %420 = vsyncpa [#allocation4], 1

// kernel: tpu_custom_call.1
$region0: #{tpu_custom_call.1}
  #allocation0 [shape = 'u32[]', space=smem, size = 0x4, offset = 0x4, fixed_abs, tag = 'smem constant byte address 0x4 - core index']
  #allocation1 [shape = 'u32[144,128]{1,0:T(1,128)}', space=vmem, size = 0x12000, scoped, tag = 'internal scratch']
  %s0 = inlined_call_operand.hbm [shape: f32[2,32], index: 0, kind: input, shape index: {}]
  %s1 = inlined_call_operand.vmem [shape: f32[2,8], index: 1, kind: input, shape index: {}]
  %s2 = inlined_call_operand.hbm [shape: bf16[8,32], index: 2, kind: input, shape index: {}]
  %s3 = inlined_call_operand.hbm [shape: bf16[32,32], index: 3, kind: input, shape index: {}]
  %s4 = inlined_call_operand.hbm [shape: bf16[32,32], index: 4, kind: input, shape index: {}]
  %s5 = inlined_call_operand.vmem [shape: bf16[32,32], index: 5, kind: input, shape index: {}]
  %s6 = inlined_call_operand.hbm [shape: f32[8,32], index: 6, kind: input, shape index: {}]
  %s7 = inlined_call_operand.hbm [shape: bf16[2,32], index: 7, kind: output, shape index: {}]
  %s8 = sld [smem:[#allocation0]]
  $region58: #{tpu_custom_call.1} parent=0
    _
  %s10 = ssub.s32 1, %s8
  %s11 = scalar_select 0, %s10, %s8
  $region1: #{tpu_custom_call.1} parent=0
    #allocation2 [shape = 'u8[1024]{0}', space=vmem, size = 0x400, scoped, tag = 'input window, operand 0, single buffered']
    #allocation3 [shape = 's32[1]{0}', space=sflag, size = 0x4, scoped, tag = 'scoped memory for tpu_custom_call.1']
    #allocation4 [shape = 's32[1]{0}', space=sflag, size = 0x4, scoped, tag = 'scoped memory for tpu_custom_call.1']
    #allocation5 [shape = 'u8[2048]{0}', space=vmem, size = 0x800, scoped, tag = 'input window, operand 2, single buffered']
    #allocation6 [shape = 's32[1]{0}', space=sflag, size = 0x4, scoped, tag = 'scoped memory for tpu_custom_call.1']
    #allocation7 [shape = 'u8[8192]{0}', space=vmem, size = 0x2000, scoped, tag = 'input window, operand 3, single buffered']
    #allocation8 [shape = 'u8[8192]{0}', space=vmem, size = 0x2000, scoped, tag = 'input window, operand 4, single buffered']
    #allocation9 [shape = 's32[1]{0}', space=sflag, size = 0x4, scoped, tag = 'scoped memory for tpu_custom_call.1']
    #allocation10 [shape = 'u8[4096]{0}', space=vmem, size = 0x1000, scoped, tag = 'input window, operand 6, single buffered']
    #allocation11 [shape = 'u8[512]{0}', space=vmem, size = 0x400, scoped, tag = 'output window, operand 0, single buffered']
    %12 = vsyncpa [#allocation3], 0
    %13 = vsyncpa [#allocation6], 0
    %14 = vsyncpa [#allocation9], 0
    %15 = vsyncpa [#allocation4], 0
    // Predicated region
    $region2: #{tpu_custom_call.1} parent=1 // pred_check
      _
    $region3: #{tpu_custom_call.1} parent=1 // pred_check_branch
      %17 = sbr.rel (0) target = $region5
    $region4: #{tpu_custom_call.1} parent=1 // pred_region
      %s19 = ssub.s32 32, 32
      %20 = vsyncadd [#allocation3], %s19
      %s22 = sshll.u32 [#allocation2], 4
      %s23 = int_to_ptr.vmem [resolvable:$true] %s22
      %25 = dma.hbm_to_vmem [thread:$0]  %s0, 32, %s23, [#allocation3]
    $region5: #{tpu_custom_call.1} parent=1 // pred_fallthru
      _
    // Predicated region
    $region6: #{tpu_custom_call.1} parent=1 // pred_check
      _
    $region7: #{tpu_custom_call.1} parent=1 // pred_check_branch
      %27 = sbr.rel (0) target = $region9
    $region8: #{tpu_custom_call.1} parent=1 // pred_region
      _
    $region9: #{tpu_custom_call.1} parent=1 // pred_fallthru
      _
    // Predicated region
    $region10: #{tpu_custom_call.1} parent=1 // pred_check
      _
    $region11: #{tpu_custom_call.1} parent=1 // pred_check_branch
      %29 = sbr.rel (0) target = $region13
    $region12: #{tpu_custom_call.1} parent=1 // pred_region
      %s31 = ssub.s32 64, 64
      %32 = vsyncadd [#allocation6], %s31
      %s34 = sshll.u32 [#allocation5], 4
      %s35 = int_to_ptr.vmem [resolvable:$true] %s34
      %37 = dma.hbm_to_vmem [thread:$0]  %s2, 64, %s35, [#allocation6]
    $region13: #{tpu_custom_call.1} parent=1 // pred_fallthru
      _
    // Predicated region
    $region14: #{tpu_custom_call.1} parent=1 // pred_check
      _
    $region15: #{tpu_custom_call.1} parent=1 // pred_check_branch
      %39 = sbr.rel (0) target = $region17
    $region16: #{tpu_custom_call.1} parent=1 // pred_region
      %s41 = ssub.s32 256, 256
      %42 = vsyncadd [#allocation6], %s41
      %s43 = sshll.u32 [#allocation7], 4
      %s44 = int_to_ptr.vmem [resolvable:$true] %s43
      %49 = dma.hbm_to_vmem [thread:$0]  %s3, 256, %s44, [#allocation6], 64, 64, 4
    $region17: #{tpu_custom_call.1} parent=1 // pred_fallthru
      _
    // Predicated region
    $region18: #{tpu_custom_call.1} parent=1 // pred_check
      _
    $region19: #{tpu_custom_call.1} parent=1 // pred_check_branch
      %51 = sbr.rel (0) target = $region21
    $region20: #{tpu_custom_call.1} parent=1 // pred_region
      %s53 = ssub.s32 256, 256
      %54 = vsyncadd [#allocation9], %s53
      %s55 = sshll.u32 [#allocation8], 4
      %s56 = int_to_ptr.vmem [resolvable:$true] %s55
      %61 = dma.hbm_to_vmem [thread:$0]  %s4, 256, %s56, [#allocation9], 64, 64, 4
    $region21: #{tpu_custom_call.1} parent=1 // pred_fallthru
      _
    // Predicated region
    $region22: #{tpu_custom_call.1} parent=1 // pred_check
      _
    $region23: #{tpu_custom_call.1} parent=1 // pred_check_branch
      %63 = sbr.rel (0) target = $region25
    $region24: #{tpu_custom_call.1} parent=1 // pred_region
      _
    $region25: #{tpu_custom_call.1} parent=1 // pred_fallthru
      _
    // Predicated region
    $region26: #{tpu_custom_call.1} parent=1 // pred_check
      _
    $region27: #{tpu_custom_call.1} parent=1 // pred_check_branch
      %65 = sbr.rel (0) target = $region29
    $region28: #{tpu_custom_call.1} parent=1 // pred_region
      %s67 = ssub.s32 128, 128
      %68 = vsyncadd [#allocation9], %s67
      %s70 = sshll.u32 [#allocation10], 4
      %s71 = int_to_ptr.vmem [resolvable:$true] %s70
      %73 = dma.hbm_to_vmem [thread:$0]  %s6, 128, %s71, [#allocation9]
    $region29: #{tpu_custom_call.1} parent=1 // pred_fallthru
      _
    // Predicated region
    $region30: #{tpu_custom_call.1} parent=1 // pred_check
      _
    $region31: #{tpu_custom_call.1} parent=1 // pred_check_branch
      %75 = sbr.rel (0) target = $region33
    $region32: #{tpu_custom_call.1} parent=1 // pred_region
      %76 = dma.done [#allocation3], 32
    $region33: #{tpu_custom_call.1} parent=1 // pred_fallthru
      _
    // Predicated region
    $region34: #{tpu_custom_call.1} parent=1 // pred_check
      _
    $region35: #{tpu_custom_call.1} parent=1 // pred_check_branch
      %78 = sbr.rel (0) target = $region37
    $region36: #{tpu_custom_call.1} parent=1 // pred_region
      %79 = dma.done [#allocation6], 64
    $region37: #{tpu_custom_call.1} parent=1 // pred_fallthru
      _
    // Predicated region
    $region38: #{tpu_custom_call.1} parent=1 // pred_check
      _
    $region39: #{tpu_custom_call.1} parent=1 // pred_check_branch
      %81 = sbr.rel (0) target = $region41
    $region40: #{tpu_custom_call.1} parent=1 // pred_region
      %82 = dma.done [#allocation6], 256
    $region41: #{tpu_custom_call.1} parent=1 // pred_fallthru
      _
    // Predicated region
    $region42: #{tpu_custom_call.1} parent=1 // pred_check
      _
    $region43: #{tpu_custom_call.1} parent=1 // pred_check_branch
      %84 = sbr.rel (0) target = $region45
    $region44: #{tpu_custom_call.1} parent=1 // pred_region
      %85 = dma.done [#allocation9], 256
    $region45: #{tpu_custom_call.1} parent=1 // pred_fallthru
      _
    // Predicated region
    $region46: #{tpu_custom_call.1} parent=1 // pred_check
      _
    $region47: #{tpu_custom_call.1} parent=1 // pred_check_branch
      %87 = sbr.rel (0) target = $region49
    $region48: #{tpu_custom_call.1} parent=1 // pred_region
      %88 = dma.done [#allocation9], 128
    $region49: #{tpu_custom_call.1} parent=1 // pred_fallthru
      _
    %v90 = vld [vmem:[#allocation10] sm:$0xff]
    %v91 = vld [vmem:[#allocation2] sm:$0x3]
    %v92 = vpack.c.bf16 %v91, %v91
    %v93 = vld [vmem:[%s1] sm:$0x3]
    %v94 = vpack.c.bf16 %v93, %v93
    %v95 = vld [vmem:[#allocation5] sm:$0xf]
    %v96 = vlaneseq
    %v97 = vshrl.u32 %v96, 7
    %v98 = vsub.s32 0, %v97
    %v99 = vrot.slane %v90, %v98
    %vm100 = vcmask 64512
    %v102 = vsel %vm100, %v94, 0
    %vm104 = vcmask 1043456
    %v106 = vsel %vm104, %v95, 0
    %108 = vmatprep.subr.bf16.mxu0 0
    %109 = vmatpush1.bf16.msra.mxu0 %v106
    %110 = vmatprep.subr.bf16.mxu0 0
    %111 = vmatpush1.bf16.msra.mxu0 0
    %112 = vmatprep.subr.bf16.mxu0 0
    %113 = vmatpush1.bf16.msra.mxu0 0
    %114 = vmatprep.subr.bf16.mxu0 0
    %115 = vmatpush1.bf16.msra.mxu0 0
    %116 = vmatprep.subr.bf16.mxu0 0
    %117 = vmatpush1.bf16.msra.mxu0 0
    %118 = vmatprep.subr.bf16.mxu0 0
    %119 = vmatpush1.bf16.msra.mxu0 0
    %120 = vmatprep.subr.bf16.mxu0 0
    %121 = vmatpush1.bf16.msra.mxu0 0
    %122 = vmatprep.subr.bf16.mxu0 0
    %123 = vmatpush1.bf16.msra.mxu0 0
    %124 = vmatprep.subr.bf16.mxu0 0
    %125 = vmatpush1.bf16.msra.mxu0 0
    %126 = vmatprep.subr.bf16.mxu0 0
    %127 = vmatpush1.bf16.msra.mxu0 0
    %128 = vmatprep.subr.bf16.mxu0 0
    %129 = vmatpush1.bf16.msra.mxu0 0
    %130 = vmatprep.subr.bf16.mxu0 0
    %131 = vmatpush1.bf16.msra.mxu0 0
    %132 = vmatprep.subr.bf16.mxu0 0
    %133 = vmatpush1.bf16.msra.mxu0 0
    %134 = vmatprep.subr.bf16.mxu0 0
    %135 = vmatpush1.bf16.msra.mxu0 0
    %136 = vmatprep.subr.bf16.mxu0 0
    %137 = vmatpush1.bf16.msra.mxu0 0
    %138 = vmatprep.subr.bf16.mxu0 0
    %139 = vmatpush1.bf16.msra.mxu0 0
    %140 = vmatprep.mubr.bf16.mxu0 0
    %141 = vmatmul.mubr.bf16.gmra.mrb[0].mxu0 %v102
    %v142 = vpop.f32.mrb[0].mxu0
    %v143 = vadd.f32 %v99, %v142
    %v144 = vpop.f32.mrb[0].mxu0
    %v145 = vpop.f32.mrb[0].mxu0
    %v146 = vpop.f32.mrb[0].mxu0
    %147 = vdwg.mxu0
    %vm148 = vcmask 254976
    %v149 = vsel %vm148, %v143, 0.0
    %150 = vadd.xlane.f32.xlu0 %v149
    %v151 = vpop.xlane.xlu0 %150
    %v152 = vmul.f32 %v143, %v143
    %v153 = vsel %vm148, %v152, 0.0
    %154 = vadd.xlane.f32.xlu0 %v153
    %v155 = vpop.xlane.xlu0 %154
    %v156 = vmul.f32 %v151, 0.03125
    %v157 = vmul.f32 %v155, 0.03125
    %v158 = vmul.f32 %v156, %v156
    %v159 = vsub.f32 %v157, %v158
    %v160 = vadd.f32 %v159, 1e-05
    %v161 = vrsqrt.pop %v160
    %v162 = vpack.c.bf16 %v143, %v143
    %v163 = vpack.c.bf16 %v156, %v156
    %v164 = vsub.bf16 %v162, %v163
    %v165 = vpack.c.bf16 %v161, %v161
    %v166 = vmul.bf16 %v164, %v165
    %v167 = vpack.c.bf16 %v90, %v90
    %v169 = vshrl.u32 %v167, 16
    %v170 = vpack.i.b16 %v169, %v169
    %v172 = vlaneseq
    %v173 = vshrl.u32 %v172, 7
    %v174 = vsub.s32 0, %v173
    %v175 = vrot.slane %v170, %v174
    %v176 = vmul.bf16 %v166, %v175
    %v177 = vpack.i.b16 %v167, %v167
    %v179 = vlaneseq
    %v180 = vshrl.u32 %v179, 7
    %v181 = vsub.s32 1, %v180
    %v182 = vrot.slane %v177, %v181
    %v183 = vadd.bf16 %v176, %v182
    %v184 = vmax.bf16 %v183, 0
    %v185 = vld [vmem:[#allocation7] sm:$0xf]
    %v186 = vld [vmem:[#allocation7 + $0x4] sm:$0xf]
    %v187 = vld [vmem:[#allocation7 + $0x8] sm:$0xf]
    %v188 = vld [vmem:[#allocation7 + $0xc] sm:$0xf]
    %v189 = vld [vmem:[#allocation8] sm:$0xf]
    %v190 = vld [vmem:[#allocation8 + $0x4] sm:$0xf]
    %v191 = vld [vmem:[#allocation8 + $0x8] sm:$0xf]
    %v192 = vld [vmem:[#allocation8 + $0xc] sm:$0xf]
    %v197 = vunpack.c.l.b16 %v189
    %v198 = vunpack.c.l.b16 %v190
    %v199 = vunpack.c.l.b16 %v191
    %v200 = vunpack.c.l.b16 %v192
    %v201 = vpack.c.b16 %v198, %v197
    %v202 = vpack.c.b16 %v200, %v199
    %vm205 = vcmask 261120
    %v207 = vsel %vm205, %v184, 0
    %209 = vmatprep.subr.bf16.mxu0 0
    %210 = vmatpush1.bf16.msra.mxu0 %v201
    %211 = vmatprep.subr.bf16.mxu0 0
    %212 = vmatpush1.bf16.msra.mxu0 %v202
    %213 = vmatprep.subr.bf16.mxu0 0
    %214 = vmatpush1.bf16.msra.mxu0 0
    %215 = vmatprep.subr.bf16.mxu0 0
    %216 = vmatpush1.bf16.msra.mxu0 0
    %217 = vmatprep.subr.bf16.mxu0 0
    %218 = vmatpush1.bf16.msra.mxu0 0
    %219 = vmatprep.subr.bf16.mxu0 0
    %220 = vmatpush1.bf16.msra.mxu0 0
    %221 = vmatprep.subr.bf16.mxu0 0
    %222 = vmatpush1.bf16.msra.mxu0 0
    %223 = vmatprep.subr.bf16.mxu0 0
    %224 = vmatpush1.bf16.msra.mxu0 0
    %225 = vmatprep.subr.bf16.mxu0 0
    %226 = vmatpush1.bf16.msra.mxu0 0
    %227 = vmatprep.subr.bf16.mxu0 0
    %228 = vmatpush1.bf16.msra.mxu0 0
    %229 = vmatprep.subr.bf16.mxu0 0
    %230 = vmatpush1.bf16.msra.mxu0 0
    %231 = vmatprep.subr.bf16.mxu0 0
    %232 = vmatpush1.bf16.msra.mxu0 0
    %233 = vmatprep.subr.bf16.mxu0 0
    %234 = vmatpush1.bf16.msra.mxu0 0
    %235 = vmatprep.subr.bf16.mxu0 0
    %236 = vmatpush1.bf16.msra.mxu0 0
    %237 = vmatprep.subr.bf16.mxu0 0
    %238 = vmatpush1.bf16.msra.mxu0 0
    %239 = vmatprep.subr.bf16.mxu0 0
    %240 = vmatpush1.bf16.msra.mxu0 0
    %241 = vmatprep.mubr.bf16.mxu0 0
    %242 = vmatmul.mubr.bf16.gmra.mrb[0].mxu0 %v207
    %v243 = vpop.f32.mrb[0].mxu0
    %v244 = vadd.f32 0.0, %v243
    %v245 = vpop.f32.mrb[0].mxu0
    %v246 = vpop.f32.mrb[0].mxu0
    %v247 = vpop.f32.mrb[0].mxu0
    %248 = vdwg.mxu0
    %v253 = vunpack.c.l.b16 %v185
    %v254 = vunpack.c.l.b16 %v186
    %v255 = vunpack.c.l.b16 %v187
    %v256 = vunpack.c.l.b16 %v188
    %v257 = vpack.c.b16 %v254, %v253
    %v258 = vpack.c.b16 %v256, %v255
    %v262 = vsel %vm205, %v92, 0
    %264 = vmatprep.subr.bf16.mxu0 0
    %265 = vmatpush1.bf16.msra.mxu0 %v257
    %266 = vmatprep.subr.bf16.mxu0 0
    %267 = vmatpush1.bf16.msra.mxu0 %v258
    %268 = vmatprep.subr.bf16.mxu0 0
    %269 = vmatpush1.bf16.msra.mxu0 0
    %270 = vmatprep.subr.bf16.mxu0 0
    %271 = vmatpush1.bf16.msra.mxu0 0
    %272 = vmatprep.subr.bf16.mxu0 0
    %273 = vmatpush1.bf16.msra.mxu0 0
    %274 = vmatprep.subr.bf16.mxu0 0
    %275 = vmatpush1.bf16.msra.mxu0 0
    %276 = vmatprep.subr.bf16.mxu0 0
    %277 = vmatpush1.bf16.msra.mxu0 0
    %278 = vmatprep.subr.bf16.mxu0 0
    %279 = vmatpush1.bf16.msra.mxu0 0
    %280 = vmatprep.subr.bf16.mxu0 0
    %281 = vmatpush1.bf16.msra.mxu0 0
    %282 = vmatprep.subr.bf16.mxu0 0
    %283 = vmatpush1.bf16.msra.mxu0 0
    %284 = vmatprep.subr.bf16.mxu0 0
    %285 = vmatpush1.bf16.msra.mxu0 0
    %286 = vmatprep.subr.bf16.mxu0 0
    %287 = vmatpush1.bf16.msra.mxu0 0
    %288 = vmatprep.subr.bf16.mxu0 0
    %289 = vmatpush1.bf16.msra.mxu0 0
    %290 = vmatprep.subr.bf16.mxu0 0
    %291 = vmatpush1.bf16.msra.mxu0 0
    %292 = vmatprep.subr.bf16.mxu0 0
    %293 = vmatpush1.bf16.msra.mxu0 0
    %294 = vmatprep.subr.bf16.mxu0 0
    %295 = vmatpush1.bf16.msra.mxu0 0
    %296 = vmatprep.mubr.bf16.mxu0 0
    %297 = vmatmul.mubr.bf16.gmra.mrb[0].mxu0 %v262
    %v298 = vpop.f32.mrb[0].mxu0
    %v299 = vadd.f32 %v244, %v298
    %v300 = vpop.f32.mrb[0].mxu0
    %v301 = vpop.f32.mrb[0].mxu0
    %v302 = vpop.f32.mrb[0].mxu0
    %303 = vdwg.mxu0
    %v304 = vlaneseq
    %v305 = vshrl.u32 %v304, 7
    %v306 = vsub.s32 3, %v305
    %v307 = vrot.slane %v90, %v306
    %v308 = vadd.f32 %v299, %v307
    %v309 = vsel %vm148, %v308, 0.0
    %310 = vadd.xlane.f32.xlu0 %v309
    %v311 = vpop.xlane.xlu0 %310
    %v312 = vmul.f32 %v308, %v308
    %v313 = vsel %vm148, %v312, 0.0
    %314 = vadd.xlane.f32.xlu0 %v313
    %v315 = vpop.xlane.xlu0 %314
    %v316 = vmul.f32 %v311, 0.03125
    %v317 = vmul.f32 %v315, 0.03125
    %v318 = vmul.f32 %v316, %v316
    %v319 = vsub.f32 %v317, %v318
    %v320 = vadd.f32 %v319, 1e-05
    %v321 = vrsqrt.pop %v320
    %v322 = vpack.c.bf16 %v308, %v308
    %v323 = vpack.c.bf16 %v316, %v316
    %v324 = vsub.bf16 %v322, %v323
    %v325 = vpack.c.bf16 %v321, %v321
    %v326 = vmul.bf16 %v324, %v325
    %v327 = vlaneseq
    %v328 = vshrl.u32 %v327, 7
    %v329 = vsub.s32 2, %v328
    %v330 = vrot.slane %v177, %v329
    %v331 = vmul.bf16 %v326, %v330
    %v332 = vlaneseq
    %v333 = vshrl.u32 %v332, 7
    %v334 = vsub.s32 2, %v333
    %v335 = vrot.slane %v170, %v334
    %v336 = vadd.bf16 %v331, %v335
    %v337 = vmax.bf16 %v336, 0
    %v338 = vld [vmem:[%s5] sm:$0xf]
    %v339 = vld [vmem:[%s5 + $0x4] sm:$0xf]
    %v340 = vld [vmem:[%s5 + $0x8] sm:$0xf]
    %v341 = vld [vmem:[%s5 + $0xc] sm:$0xf]
    %v342 = vlaneseq
    %v343 = vshrl.u32 %v342, 7
    %v344 = vsub.s32 6, %v343
    %v345 = vrot.slane %v90, %v344
    %v350 = vunpack.c.l.b16 %v338
    %v351 = vunpack.c.l.b16 %v339
    %v352 = vunpack.c.l.b16 %v340
    %v353 = vunpack.c.l.b16 %v341
    %v354 = vpack.c.b16 %v351, %v350
    %v355 = vpack.c.b16 %v353, %v352
    %v359 = vsel %vm205, %v337, 0
    %361 = vmatprep.subr.bf16.mxu0 0
    %362 = vmatpush1.bf16.msra.mxu0 %v354
    %363 = vmatprep.subr.bf16.mxu0 0
    %364 = vmatpush1.bf16.msra.mxu0 %v355
    %365 = vmatprep.subr.bf16.mxu0 0
    %366 = vmatpush1.bf16.msra.mxu0 0
    %367 = vmatprep.subr.bf16.mxu0 0
    %368 = vmatpush1.bf16.msra.mxu0 0
    %369 = vmatprep.subr.bf16.mxu0 0
    %370 = vmatpush1.bf16.msra.mxu0 0
    %371 = vmatprep.subr.bf16.mxu0 0
    %372 = vmatpush1.bf16.msra.mxu0 0
    %373 = vmatprep.subr.bf16.mxu0 0
    %374 = vmatpush1.bf16.msra.mxu0 0
    %375 = vmatprep.subr.bf16.mxu0 0
    %376 = vmatpush1.bf16.msra.mxu0 0
    %377 = vmatprep.subr.bf16.mxu0 0
    %378 = vmatpush1.bf16.msra.mxu0 0
    %379 = vmatprep.subr.bf16.mxu0 0
    %380 = vmatpush1.bf16.msra.mxu0 0
    %381 = vmatprep.subr.bf16.mxu0 0
    %382 = vmatpush1.bf16.msra.mxu0 0
    %383 = vmatprep.subr.bf16.mxu0 0
    %384 = vmatpush1.bf16.msra.mxu0 0
    %385 = vmatprep.subr.bf16.mxu0 0
    %386 = vmatpush1.bf16.msra.mxu0 0
    %387 = vmatprep.subr.bf16.mxu0 0
    %388 = vmatpush1.bf16.msra.mxu0 0
    %389 = vmatprep.subr.bf16.mxu0 0
    %390 = vmatpush1.bf16.msra.mxu0 0
    %391 = vmatprep.subr.bf16.mxu0 0
    %392 = vmatpush1.bf16.msra.mxu0 0
    %393 = vmatprep.mubr.bf16.mxu0 0
    %394 = vmatmul.mubr.bf16.gmra.mrb[0].mxu0 %v359
    %v395 = vpop.f32.mrb[0].mxu0
    %v396 = vadd.f32 %v345, %v395
    %v397 = vpop.f32.mrb[0].mxu0
    %v398 = vpop.f32.mrb[0].mxu0
    %v399 = vpop.f32.mrb[0].mxu0
    %400 = vdwg.mxu0
    %v401 = vpack.c.bf16 %v396, %v396
    %vm402 = vcmask 253952
    %403 = vst.msk [vmem:[#allocation11] sm:$0x1] %vm402, %v401
    // Predicated region
    $region50: #{tpu_custom_call.1} parent=1 // pred_check
      _
    $region51: #{tpu_custom_call.1} parent=1 // pred_check_branch
      %405 = sbr.rel (0) target = $region53
    $region52: #{tpu_custom_call.1} parent=1 // pred_region
      %s407 = ssub.s32 16, 16
      %408 = vsyncadd [#allocation4], %s407
      %s410 = sshll.u32 [#allocation11], 4
      %s411 = int_to_ptr.vmem [resolvable:$true] %s410
      %413 = dma.vmem_to_hbm [thread:$0]  %s411, 16, %s7, [#allocation4]
    $region53: #{tpu_custom_call.1} parent=1 // pred_fallthru
      _
    // Predicated region
    $region54: #{tpu_custom_call.1} parent=1 // pred_check
      _
    $region55: #{tpu_custom_call.1} parent=1 // pred_check_branch
      %415 = sbr.rel (0) target = $region57
    $region56: #{tpu_custom_call.1} parent=1 // pred_region
      %416 = dma.done [#allocation4], 16
    $region57: #{tpu_custom_call.1} parent=1 // pred_fallthru
      _
    %417 = vsyncpa [#allocation3], 1
    %418 = vsyncpa [#allocation6], 1
    %419 = vsyncpa [#allocation9], 1
    %420 = vsyncpa [#allocation4], 1

</llo_original>
